<compile_context>
chip_gen: v7x
topology: tpu7x:2x2x1
jax: 0.10.0
libtpu: 0.0.40
codegen_flags: <defaults>
</compile_context>

<pallas_src>
import functools
import math

import jax
import jax.numpy as jnp
from jax import lax
from jax.experimental import pallas as pl
from jax.experimental.pallas import tpu as pltpu


# Contract the minor dim of both operands (A @ B^T).  The big operand keeps its
# natural (samples, features) layout; the MXU emits a lane-dense
# (features, samples) result, so no transpose of the states is materialized.
_NT_DIMS = (((1,), (1,)), ((), ()))


def _kl_kernel(s_ref, a_ref, w_ref, out_ref, *, da, n_samples):
    c = pl.program_id(0)            # core-split slot      ("parallel")
    i = pl.program_id(1)            # sample-tile step     ("arbitrary" reduction)

    @pl.when(i == 0)
    def _init():
        out_ref[...] = jnp.zeros_like(out_ref)

    tile_n = s_ref.shape[0]
    s = s_ref[...]                   # (tile_n, Ds)  natural layout, contiguous DMA
    a = a_ref[...]                   # (tile_n, Da)  natural layout, contiguous DMA

    # means^T = W_fused @ s^T : (2*Da, tile_n), lane-dense (samples on lanes).
    means_t = lax.dot_general(
        w_ref[...], s, _NT_DIMS, preferred_element_type=jnp.float32)

    # Only the tiny actions block is transposed in-kernel (XLU, hidden under
    # the DMA/MXU time); upcast first so compute stays f32 even for bf16 input.
    a_t = a.astype(jnp.float32).T                                # (Da, tile_n)

    d_old = a_t - means_t[:da, :]                                # (Da, tile_n)
    d_new = a_t - means_t[da:, :]                                # (Da, tile_n)
    sq_old = jnp.sum(d_old * d_old, axis=0, keepdims=True)       # (1, tile_n)
    sq_new = jnp.sum(d_new * d_new, axis=0, keepdims=True)       # (1, tile_n)

    # p * (log_p - log_q) with the Gaussian norm constant and the 0.5 factored
    # out (applied once in the wrapper): exp(-0.5*sq_old) * (sq_new - sq_old).
    contrib = jnp.exp(-0.5 * sq_old) * (sq_new - sq_old)         # (1, tile_n)

    # Mask rows past N (partial last tile / clamped overshoot tiles of the core
    # split).  `where` is a select, so garbage in padded rows is harmless.
    base = (c * pl.num_programs(1) + i) * tile_n
    lane = lax.broadcasted_iota(jnp.int32, (1, tile_n), 1)
    contrib = jnp.where(base + lane < n_samples, contrib, 0.0)

    # Per-lane partial sums, resident in VMEM across the reduction axis.
    out_ref[...] += contrib[None]


def trpo_kl_div(flat_states, flat_actions, w_new, w_old, *,
                tile_n=None, max_tile_n=16384, num_core_splits=2):
    """KL( old_policy || policy ) summed over all (state, action) samples.

    flat_states:  (N, Ds)  f32 or bf16 (bf16 halves HBM traffic; math stays f32)
    flat_actions: (N, Da)  f32 or bf16
    w_new, w_old: (Ds, Da) deterministic Gaussian policy means: a ~ N(s @ W, I)
    """
    n, ds = flat_states.shape
    n_a, da = flat_actions.shape
    assert n_a == n

    # Tile selection: one block if everything fits, otherwise a large tile
    # sized against the scoped-VMEM budget.  16K f32 rows (Ds=32, Da=8) is
    # ~5 MB of double-buffered inputs + ~4 MB of temporaries: fits v5e's
    # 16 MiB default scoped VMEM and v7x's 32 MiB, and amortizes the ~0.35 us
    # per-grid-step overhead to <3% on every generation.
    if tile_n is None:
        tile_n = n if n <= max_tile_n else max_tile_n
    assert tile_n == n or tile_n % 8 == 0, "tiles must be sublane-aligned"
    n_blocks = pl.cdiv(n, tile_n)

    # v7x has 2 TensorCores per chip: shard the sample tiles across them via a
    # leading "parallel" grid axis with one partial-sum slot per core.  On
    # single-TC chips (v5e/v6e) the extra axis is just a serial loop.
    splits = num_core_splits if n_blocks >= num_core_splits else 1
    tiles_per_split = pl.cdiv(n_blocks, splits)

    def data_map(c, i):
        # Clamp overshoot tiles (splits*tiles_per_split > n_blocks) onto a valid
        # block; their rows are masked to zero inside the kernel.
        return (jnp.minimum(c * tiles_per_split + i, n_blocks - 1), 0)

    # Tiny fused weight (2*Da, Ds): rows [0:Da) = old policy, [Da:2*Da) = new.
    w_fused_t = jnp.concatenate([w_old, w_new], axis=1).T.astype(flat_states.dtype)

    kernel = functools.partial(_kl_kernel, da=da, n_samples=n)

    partials = pl.pallas_call(
        kernel,
        out_shape=jax.ShapeDtypeStruct((splits, 1, tile_n), jnp.float32),
        grid_spec=pltpu.PrefetchScalarGridSpec(
            num_scalar_prefetch=0,
            grid=(splits, tiles_per_split),
            in_specs=[
                pl.BlockSpec((tile_n, ds), data_map),            # states (natural)
                pl.BlockSpec((tile_n, da), data_map),            # actions (natural)
                pl.BlockSpec((2 * da, ds), lambda c, i: (0, 0)),  # fused weights
            ],
            out_specs=pl.BlockSpec((1, 1, tile_n), lambda c, i: (c, 0, 0)),
        ),
        compiler_params=pltpu.CompilerParams(
            dimension_semantics=("parallel", "arbitrary"),
            vmem_limit_bytes=32 * 1024 * 1024,
        ),
    )(flat_states, flat_actions, w_fused_t)

    # Finalize: tiny combine of the per-lane / per-core partial sums, with the
    # Gaussian norm constant and the 0.5 factor applied exactly once.
    scale = 0.5 * math.exp(-0.5 * da * math.log(2.0 * math.pi))
    return scale * jnp.sum(partials)


def trpo_loss_forward(policy, state_tensor, action_tensor, reward_tensor, cumulative_rollout):
    # Faithful to the PyTorch module: forward() returns None.
    return None


def _kl_reference(flat_states, flat_actions, w_new, w_old):
    da = flat_actions.shape[-1]
    c = 0.5 * da * math.log(2.0 * math.pi)
    mean_old = flat_states @ w_old
    mean_new = flat_states @ w_new
    log_p = -0.5 * jnp.sum((flat_actions - mean_old) ** 2, axis=-1) - c
    log_q = -0.5 * jnp.sum((flat_actions - mean_new) ** 2, axis=-1) - c
    return jnp.sum(jnp.exp(log_p) * (log_p - log_q))


if __name__ == "__main__":
    # trajectory_length=16, simulations=4  ->  N = 64 flattened samples
    trajectory_length, simulations = 16, 4
    N = trajectory_length * simulations
    Ds, Da = 32, 8

    key = jax.random.PRNGKey(0)
    k_s, k_a, k_wn, k_wo = jax.random.split(key, 4)
    flat_states = jax.random.normal(k_s, (N, Ds), dtype=jnp.float32)
    flat_actions = jax.random.normal(k_a, (N, Da), dtype=jnp.float32)
    # Deterministic policy parameters (new policy = slightly perturbed old policy).
    w_old = 0.1 * jax.random.normal(k_wo, (Ds, Da), dtype=jnp.float32)
    w_new = w_old + 0.01 * jax.random.normal(k_wn, (Ds, Da), dtype=jnp.float32)

    # forward() per the module contract.
    assert trpo_loss_forward(None, flat_states, flat_actions, None, None) is None

    # 1) single-tile path.
    kl = jax.block_until_ready(trpo_kl_div(flat_states, flat_actions, w_new, w_old))
    ref = _kl_reference(flat_states, flat_actions, w_new, w_old)
    if not jnp.allclose(kl, ref, rtol=1e-5, atol=1e-5):
        raise AssertionError(f"single-tile mismatch: pallas={kl} ref={ref}")

    # 2) multi-tile + core-split path (N divisible by the tile).
    kl2 = jax.block_until_ready(
        trpo_kl_div(flat_states, flat_actions, w_new, w_old, tile_n=16))
    if not jnp.allclose(kl2, ref, rtol=1e-5, atol=1e-5):
        raise AssertionError(f"multi-tile mismatch: pallas={kl2} ref={ref}")

    # 3) ragged N: partial last tile + clamped overshoot tile are masked to 0.
    n_ragged = 40
    kl3 = jax.block_until_ready(
        trpo_kl_div(flat_states[:n_ragged], flat_actions[:n_ragged],
                    w_new, w_old, tile_n=16))
    ref3 = _kl_reference(flat_states[:n_ragged], flat_actions[:n_ragged], w_new, w_old)
    if not jnp.allclose(kl3, ref3, rtol=1e-5, atol=1e-5):
        raise AssertionError(f"ragged-N mismatch: pallas={kl3} ref={ref3}")

    print("KERNEL_OK")
</pallas_src>

<mosaic_0001>
module attributes {stable_mosaic.version = 11 : i64} {
  func.func @_kl_kernel(%arg0: i32, %arg1: i32, %arg2: memref<64x32xf32, #tpu.memory_space<vmem>>, %arg3: memref<64x8xf32, #tpu.memory_space<vmem>>, %arg4: memref<16x32xf32, #tpu.memory_space<vmem>>, %arg5: memref<1x1x64xf32, #tpu.memory_space<vmem>>) attributes {dimension_semantics = [#tpu.dimension_semantics<parallel>, #tpu.dimension_semantics<arbitrary>], iteration_bounds = array<i64: 1, 1>, scalar_prefetch = 0 : i64, scratch_operands = 0 : i64, tpu.core_type = #tpu.core_type<tc>, window_params = [{transform_indices = @transform_0, window_bounds = array<i64: 64, 32>}, {transform_indices = @transform_1, window_bounds = array<i64: 64, 8>}, {pipeline_mode = #tpu.pipeline_mode<synchronous>, transform_indices = @transform_2, window_bounds = array<i64: 16, 32>}, {transform_indices = @transform_3, window_bounds = array<i64: 1, 1, 64>}]} {
    %c0_i32 = arith.constant 0 : i32
    %0 = arith.cmpi eq, %arg1, %c0_i32 : i32
    %1 = arith.extui %0 : i1 to i32
    %c0_i32_0 = arith.constant 0 : i32
    %2 = arith.cmpi ne, %1, %c0_i32_0 : i32
    scf.if %2 {
      %cst_17 = arith.constant 0.000000e+00 : f32
      %37 = vector.broadcast %cst_17 : f32 to vector<1x1x64xf32>
      %c0_18 = arith.constant 0 : index
      %c0_19 = arith.constant 0 : index
      %c0_20 = arith.constant 0 : index
      %38 = vector.load %arg5[%c0_18, %c0_19, %c0_20] : memref<1x1x64xf32, #tpu.memory_space<vmem>>, vector<1x1x64xf32>
      tpu.vector_store %arg5[%c0_18, %c0_19, %c0_20], %37 {strides = array<i32>} : memref<1x1x64xf32, #tpu.memory_space<vmem>>, vector<1x1x64xf32>,
    } else {
    }
    %c0 = arith.constant 0 : index
    %c0_1 = arith.constant 0 : index
    %3 = vector.load %arg2[%c0, %c0_1] : memref<64x32xf32, #tpu.memory_space<vmem>>, vector<64x32xf32>
    %c0_2 = arith.constant 0 : index
    %c0_3 = arith.constant 0 : index
    %4 = vector.load %arg3[%c0_2, %c0_3] : memref<64x8xf32, #tpu.memory_space<vmem>>, vector<64x8xf32>
    %c0_4 = arith.constant 0 : index
    %c0_5 = arith.constant 0 : index
    %5 = vector.load %arg4[%c0_4, %c0_5] : memref<16x32xf32, #tpu.memory_space<vmem>>, vector<16x32xf32>
    %cst = arith.constant dense<0.000000e+00> : vector<16x64xf32>
    %6 = tpu.matmul %5, %3, %cst {dimension_numbers = #tpu.dot_dimension_numbers<[1], [1], [0], [0], [0, 0, 1, 0], [], []>} : vector<16x32xf32>, vector<64x32xf32>, vector<16x64xf32> -> vector<16x64xf32>
    %7 = tpu.transpose %4, [1, 0] : vector<64x8xf32> -> vector<8x64xf32>
    %8 = vector.extract_strided_slice %6 {offsets = [0, 0], sizes = [8, 64], strides = [1, 1]} : vector<16x64xf32> to vector<8x64xf32>
    %9 = arith.subf %7, %8 : vector<8x64xf32>
    %10 = vector.extract_strided_slice %6 {offsets = [8, 0], sizes = [8, 64], strides = [1, 1]} : vector<16x64xf32> to vector<8x64xf32>
    %11 = arith.subf %7, %10 : vector<8x64xf32>
    %12 = arith.mulf %9, %9 : vector<8x64xf32>
    %cst_6 = arith.constant dense<0.000000e+00> : vector<64xf32>
    %13 = vector.multi_reduction <add>, %12, %cst_6 [0] : vector<8x64xf32> to vector<64xf32>
    %14 = vector.shape_cast %13 : vector<64xf32> to vector<1x64xf32>
    %15 = arith.mulf %11, %11 : vector<8x64xf32>
    %cst_7 = arith.constant dense<0.000000e+00> : vector<64xf32>
    %16 = vector.multi_reduction <add>, %15, %cst_7 [0] : vector<8x64xf32> to vector<64xf32>
    %17 = vector.shape_cast %16 : vector<64xf32> to vector<1x64xf32>
    %cst_8 = arith.constant -5.000000e-01 : f32
    %18 = vector.broadcast %cst_8 : f32 to vector<1x64xf32>
    %19 = arith.mulf %18, %14 : vector<1x64xf32>
    %20 = math.exp %19 : vector<1x64xf32>
    %21 = arith.subf %17, %14 : vector<1x64xf32>
    %22 = arith.mulf %20, %21 : vector<1x64xf32>
    %c1_i32 = arith.constant 1 : i32
    %23 = arith.muli %arg0, %c1_i32 : i32
    %24 = arith.addi %23, %arg1 : i32
    %c64_i32 = arith.constant 64 : i32
    %25 = arith.muli %24, %c64_i32 : i32
    %26 = tpu.iota {dimensions = array<i32: 1>} : vector<1x64xi32>
    %27 = vector.broadcast %25 : i32 to vector<1x64xi32>
    %28 = arith.addi %27, %26 : vector<1x64xi32>
    %c64_i32_9 = arith.constant 64 : i32
    %29 = vector.broadcast %c64_i32_9 : i32 to vector<1x64xi32>
    %30 = arith.cmpi slt, %28, %29 : vector<1x64xi32>
    %cst_10 = arith.constant 0.000000e+00 : f32
    %31 = vector.broadcast %cst_10 : f32 to vector<1x64xf32>
    %32 = arith.select %30, %22, %31 : vector<1x64xi1>, vector<1x64xf32>
    %c0_11 = arith.constant 0 : index
    %c0_12 = arith.constant 0 : index
    %c0_13 = arith.constant 0 : index
    %33 = vector.load %arg5[%c0_11, %c0_12, %c0_13] : memref<1x1x64xf32, #tpu.memory_space<vmem>>, vector<1x1x64xf32>
    %34 = vector.shape_cast %32 : vector<1x64xf32> to vector<1x1x64xf32>
    %35 = arith.addf %33, %34 : vector<1x1x64xf32>
    %c0_14 = arith.constant 0 : index
    %c0_15 = arith.constant 0 : index
    %c0_16 = arith.constant 0 : index
    %36 = vector.load %arg5[%c0_14, %c0_15, %c0_16] : memref<1x1x64xf32, #tpu.memory_space<vmem>>, vector<1x1x64xf32>
    tpu.vector_store %arg5[%c0_14, %c0_15, %c0_16], %35 {strides = array<i32>} : memref<1x1x64xf32, #tpu.memory_space<vmem>>, vector<1x1x64xf32>,
    return
  }
  func.func @transform_0(%arg0: i32, %arg1: i32) -> (i32, i32) {
    %c1_i32 = arith.constant 1 : i32
    %0 = arith.muli %arg0, %c1_i32 : i32
    %1 = arith.addi %0, %arg1 : i32
    %c0_i32 = arith.constant 0 : i32
    %2 = arith.minsi %1, %c0_i32 : i32
    %c0_i32_0 = arith.constant 0 : i32
    %c0_i32_1 = arith.constant 0 : i32
    return %2, %c0_i32_0 : i32, i32
  }
  func.func @transform_1(%arg0: i32, %arg1: i32) -> (i32, i32) {
    %c1_i32 = arith.constant 1 : i32
    %0 = arith.muli %arg0, %c1_i32 : i32
    %1 = arith.addi %0, %arg1 : i32
    %c0_i32 = arith.constant 0 : i32
    %2 = arith.minsi %1, %c0_i32 : i32
    %c0_i32_0 = arith.constant 0 : i32
    %c0_i32_1 = arith.constant 0 : i32
    return %2, %c0_i32_0 : i32, i32
  }
  func.func @transform_2(%arg0: i32, %arg1: i32) -> (i32, i32) {
    %c0_i32 = arith.constant 0 : i32
    %c0_i32_0 = arith.constant 0 : i32
    %c0_i32_1 = arith.constant 0 : i32
    return %c0_i32, %c0_i32_0 : i32, i32
  }
  func.func @transform_3(%arg0: i32, %arg1: i32) -> (i32, i32, i32) {
    %c0_i32 = arith.constant 0 : i32
    %c0_i32_0 = arith.constant 0 : i32
    %c0_i32_1 = arith.constant 0 : i32
    return %arg0, %c0_i32, %c0_i32_0 : i32, i32, i32
  }
}

</mosaic_0001>

<llo_original>
// kernel: tpu_custom_call.1
$region0: #{tpu_custom_call.1}
  #allocation0 [shape = 'u32[]', space=smem, size = 0x4, offset = 0x4, fixed_abs, tag = 'smem constant byte address 0x4 - core index']
  #allocation1 [shape = 'u32[144,128]{1,0:T(1,128)}', space=vmem, size = 0x12000, scoped, tag = 'internal scratch']
  %s0 = inlined_call_operand.vmem [shape: f32[64,32], index: 0, kind: input, shape index: {}]
  %s1 = inlined_call_operand.vmem [shape: f32[64,8], index: 1, kind: input, shape index: {}]
  %s2 = inlined_call_operand.vmem [shape: f32[16,32], index: 2, kind: input, shape index: {}]
  %s3 = inlined_call_operand.hbm [shape: f32[1,1,64], index: 3, kind: output, shape index: {}]
  %s4 = sld [smem:[#allocation0]]
  $region26: #{tpu_custom_call.1} parent=0
    _
  %s6 = ssub.s32 1, %s4
  %s7 = scalar_select 0, %s6, %s4
  $region1: #{tpu_custom_call.1} parent=0
    #allocation2 [shape = 'u8[512]{0}', space=vmem, size = 0x400, scoped, tag = 'output window, operand 0, single buffered']
    #allocation3 [shape = 's32[1]{0}', space=sflag, size = 0x4, scoped, tag = 'scoped memory for tpu_custom_call.1']
    %8 = vsyncpa [#allocation3], 0
    // Predicated region
    $region2: #{tpu_custom_call.1} parent=1 // pred_check
      _
    $region3: #{tpu_custom_call.1} parent=1 // pred_check_branch
      %10 = sbr.rel (0) target = $region5
    $region4: #{tpu_custom_call.1} parent=1 // pred_region
      %s11 = sadd.s32 0, 0
      %p12 = scmp.lt.s32.totalorder %s11, 0
      %s13 = scalar_select %p12, %s11, 0
      %s14 = smul.u32 8, %s13
      %p15 = scmp.lt.s32.totalorder %s14, 7
      %s16 = scalar_select %p15, %s14, 7
      %s17 = smul.addr %s16, 8
      %s18 = scalar_lea.vmem %s0, %s17
      %s19 = sadd.s32 0, 0
      %p20 = scmp.lt.s32.totalorder %s19, 0
      %s21 = scalar_select %p20, %s19, 0
      %s22 = smul.u32 8, %s21
    $region5: #{tpu_custom_call.1} parent=1 // pred_fallthru
      _
    // Predicated region
    $region6: #{tpu_custom_call.1} parent=1 // pred_check
      _
    $region7: #{tpu_custom_call.1} parent=1 // pred_check_branch
      %24 = sbr.rel (0) target = $region9
    $region8: #{tpu_custom_call.1} parent=1 // pred_region
      %s25 = sadd.s32 0, 0
      %p26 = scmp.lt.s32.totalorder %s25, 0
      %s27 = scalar_select %p26, %s25, 0
      %s28 = smul.u32 8, %s27
      %p29 = scmp.lt.s32.totalorder %s28, 7
      %s30 = scalar_select %p29, %s28, 7
      %s31 = smul.addr %s30, 8
      %s32 = scalar_lea.vmem %s1, %s31
      %s33 = sadd.s32 0, 0
      %p34 = scmp.lt.s32.totalorder %s33, 0
      %s35 = scalar_select %p34, %s33, 0
      %s36 = smul.u32 8, %s35
    $region9: #{tpu_custom_call.1} parent=1 // pred_fallthru
      _
    // Predicated region
    $region10: #{tpu_custom_call.1} parent=1 // pred_check
      _
    $region11: #{tpu_custom_call.1} parent=1 // pred_check_branch
      %38 = sbr.rel (0) target = $region13
    $region12: #{tpu_custom_call.1} parent=1 // pred_region
      _
    $region13: #{tpu_custom_call.1} parent=1 // pred_fallthru
      _
    %s39 = sadd.s32 0, 0
    %p40 = scmp.lt.s32.totalorder %s39, 0
    %s41 = scalar_select %p40, %s39, 0
    %s42 = smul.u32 8, %s41
    %p43 = scmp.lt.s32.totalorder %s42, 7
    %s44 = scalar_select %p43, %s42, 7
    %s45 = smul.addr %s44, 8
    %s46 = scalar_lea.vmem %s0, %s45
    %s47 = sadd.s32 0, 0
    %p48 = scmp.lt.s32.totalorder %s47, 0
    %s49 = scalar_select %p48, %s47, 0
    %s50 = smul.u32 8, %s49
    %p51 = scmp.lt.s32.totalorder %s50, 7
    %s52 = scalar_select %p51, %s50, 7
    %s53 = smul.addr %s52, 8
    %s54 = scalar_lea.vmem %s1, %s53
    %s55 = sadd.s32 0, 0
    %p56 = scmp.lt.s32.totalorder %s55, 0
    %s57 = scalar_select %p56, %s55, 0
    %s58 = smul.u32 8, %s57
    %p59 = scmp.lt.s32.totalorder %s58, 7
    %s60 = scalar_select %p59, %s58, 7
    %s61 = smul.addr %s60, 8
    %s62 = scalar_lea.vmem %s0, %s61
    %s63 = sadd.s32 0, 0
    %p64 = scmp.lt.s32.totalorder %s63, 0
    %s65 = scalar_select %p64, %s63, 0
    %s66 = smul.u32 8, %s65
    %s67 = sadd.s32 0, 0
    %p68 = scmp.lt.s32.totalorder %s67, 0
    %s69 = scalar_select %p68, %s67, 0
    %s70 = smul.u32 8, %s69
    %p71 = scmp.lt.s32.totalorder %s70, 7
    %s72 = scalar_select %p71, %s70, 7
    %s73 = smul.addr %s72, 8
    %s74 = scalar_lea.vmem %s1, %s73
    %s75 = sadd.s32 0, 0
    %p76 = scmp.lt.s32.totalorder %s75, 0
    %s77 = scalar_select %p76, %s75, 0
    %s78 = smul.u32 8, %s77
    %p79 = scmp.eq.s32.totalorder 0, 0
    // Predicated region
    $region14: #{tpu_custom_call.1} parent=1 // pred_check
      %p80 = pneg %p79
    $region15: #{tpu_custom_call.1} parent=1 // pred_check_branch
      %82 = sbr.rel (%p80) target = $region17
    $region16: #{tpu_custom_call.1} parent=1 // pred_region
      %vm83 = vcmask 516096
      %84 = vst.msk [vmem:[#allocation2] sm:$0x1] %vm83, 0.0
    $region17: #{tpu_custom_call.1} parent=1 // pred_fallthru
      _
    %v85 = vld [vmem:[%s62] sm:$0xff]
    %v86 = vld [vmem:[%s62 + $0x8] sm:$0xff]
    %v87 = vld [vmem:[%s62 + $0x10] sm:$0xff]
    %v88 = vld [vmem:[%s62 + $0x18] sm:$0xff]
    %v89 = vld [vmem:[%s62 + $0x20] sm:$0xff]
    %v90 = vld [vmem:[%s62 + $0x28] sm:$0xff]
    %v91 = vld [vmem:[%s62 + $0x30] sm:$0xff]
    %v92 = vld [vmem:[%s62 + $0x38] sm:$0xff]
    %v93 = vld [vmem:[%s74] sm:$0xff]
    %v94 = vld [vmem:[%s74 + $0x8] sm:$0xff]
    %v95 = vld [vmem:[%s74 + $0x10] sm:$0xff]
    %v96 = vld [vmem:[%s74 + $0x18] sm:$0xff]
    %v97 = vld [vmem:[%s74 + $0x20] sm:$0xff]
    %v98 = vld [vmem:[%s74 + $0x28] sm:$0xff]
    %v99 = vld [vmem:[%s74 + $0x30] sm:$0xff]
    %v100 = vld [vmem:[%s74 + $0x38] sm:$0xff]
    %v101 = vld [vmem:[%s2] sm:$0xff]
    %v102 = vld [vmem:[%s2 + $0x8] sm:$0xff]
    %vm103 = vcmask 261120
    %v105 = vsel %vm103, %v101, 0
    %v108 = vsel %vm103, %v102, 0
    %v111 = vsel %vm103, %v85, 0
    %v114 = vsel %vm103, %v86, 0
    %v117 = vsel %vm103, %v87, 0
    %v120 = vsel %vm103, %v88, 0
    %v123 = vsel %vm103, %v89, 0
    %v126 = vsel %vm103, %v90, 0
    %v129 = vsel %vm103, %v91, 0
    %v132 = vsel %vm103, %v92, 0
    %134 = vmatprep.subr.mxu0 0.0
    %135 = vmatpush1.xpose.msra.mxu0 %v111
    %136 = vmatprep.subr.mxu0 0.0
    %137 = vmatpush1.xpose.msra.mxu0 %v114
    %138 = vmatprep.subr.mxu0 0.0
    %139 = vmatpush1.xpose.msra.mxu0 %v117
    %140 = vmatprep.subr.mxu0 0.0
    %141 = vmatpush1.xpose.msra.mxu0 %v120
    %142 = vmatprep.subr.mxu0 0.0
    %143 = vmatpush1.xpose.msra.mxu0 %v123
    %144 = vmatprep.subr.mxu0 0.0
    %145 = vmatpush1.xpose.msra.mxu0 %v126
    %146 = vmatprep.subr.mxu0 0.0
    %147 = vmatpush1.xpose.msra.mxu0 %v129
    %148 = vmatprep.subr.mxu0 0.0
    %149 = vmatpush1.xpose.msra.mxu0 %v132
    %150 = vmatprep.subr.mxu0 0.0
    %151 = vmatpush1.xpose.msra.mxu0 0.0
    %152 = vmatprep.subr.mxu0 0.0
    %153 = vmatpush1.xpose.msra.mxu0 0.0
    %154 = vmatprep.subr.mxu0 0.0
    %155 = vmatpush1.xpose.msra.mxu0 0.0
    %156 = vmatprep.subr.mxu0 0.0
    %157 = vmatpush1.xpose.msra.mxu0 0.0
    %158 = vmatprep.subr.mxu0 0.0
    %159 = vmatpush1.xpose.msra.mxu0 0.0
    %160 = vmatprep.subr.mxu0 0.0
    %161 = vmatpush1.xpose.msra.mxu0 0.0
    %162 = vmatprep.subr.mxu0 0.0
    %163 = vmatpush1.xpose.msra.mxu0 0.0
    %164 = vmatprep.subr.mxu0 0.0
    %165 = vmatpush1.xpose.msra.mxu0 0.0
    %166 = vmatprep.subr.mxu0 0.0
    %167 = vmatpush1.xpose.msra.mxu0 0.0
    %168 = vmatprep.subr.mxu0 0.0
    %169 = vmatpush1.xpose.msra.mxu0 0.0
    %170 = vmatprep.subr.mxu0 0.0
    %171 = vmatpush1.xpose.msra.mxu0 0.0
    %172 = vmatprep.subr.mxu0 0.0
    %173 = vmatpush1.xpose.msra.mxu0 0.0
    %174 = vmatprep.subr.mxu0 0.0
    %175 = vmatpush1.xpose.msra.mxu0 0.0
    %176 = vmatprep.subr.mxu0 0.0
    %177 = vmatpush1.xpose.msra.mxu0 0.0
    %178 = vmatprep.subr.mxu0 0.0
    %179 = vmatpush1.xpose.msra.mxu0 0.0
    %180 = vmatprep.subr.mxu0 0.0
    %181 = vmatpush1.xpose.msra.mxu0 0.0
    %182 = vmatprep.subr.mxu0 0.0
    %183 = vmatpush1.xpose.msra.mxu0 0.0
    %184 = vmatprep.subr.mxu0 0.0
    %185 = vmatpush1.xpose.msra.mxu0 0.0
    %186 = vmatprep.subr.mxu0 0.0
    %187 = vmatpush1.xpose.msra.mxu0 0.0
    %188 = vmatprep.subr.mxu0 0.0
    %189 = vmatpush1.xpose.msra.mxu0 0.0
    %190 = vmatprep.subr.mxu0 0.0
    %191 = vmatpush1.xpose.msra.mxu0 0.0
    %192 = vmatprep.subr.mxu0 0.0
    %193 = vmatpush1.xpose.msra.mxu0 0.0
    %194 = vmatprep.subr.mxu0 0.0
    %195 = vmatpush1.xpose.msra.mxu0 0.0
    %196 = vmatprep.subr.mxu0 0.0
    %197 = vmatpush1.xpose.msra.mxu0 0.0
    %198 = vmatprep.mubr.f32.mxu0 0.0
    %199 = vmatmul.mubr.f32.gmra.mrb[0].mxu0 %v105
    %v200 = vpop.f32.mrb[0].mxu0
    %v201 = vadd.f32 0.0, %v200
    %v202 = vpop.f32.mrb[0].mxu0
    %203 = vmatprep.mubr.f32.mxu0 0.0
    %204 = vmatmul.mubr.f32.gmra.mrb[0].mxu0 %v108
    %v205 = vpop.f32.mrb[0].mxu0
    %v206 = vadd.f32 0.0, %v205
    %v207 = vpop.f32.mrb[0].mxu0
    %208 = vdwg.mxu0
    %209 = vxpose.xlu0.b32.start [1/16] %v93, 128
    %210 = vxpose.xlu0.b32.cont [2/16] %v94, 128
    %211 = vxpose.xlu0.b32.cont [3/16] %v95, 128
    %212 = vxpose.xlu0.b32.cont [4/16] %v96, 128
    %213 = vxpose.xlu0.b32.cont [5/16] %v97, 128
    %214 = vxpose.xlu0.b32.cont [6/16] %v98, 128
    %215 = vxpose.xlu0.b32.cont [7/16] %v99, 128
    %216 = vxpose.xlu0.b32.cont [8/16] %v100, 128
    %217 = vxpose.xlu0.b32.cont [9/16] 0.0, 128
    %218 = vxpose.xlu0.b32.cont [10/16] 0.0, 128
    %219 = vxpose.xlu0.b32.cont [11/16] 0.0, 128
    %220 = vxpose.xlu0.b32.cont [12/16] 0.0, 128
    %221 = vxpose.xlu0.b32.cont [13/16] 0.0, 128
    %222 = vxpose.xlu0.b32.cont [14/16] 0.0, 128
    %223 = vxpose.xlu0.b32.cont [15/16] 0.0, 128
    %224 = vxpose.xlu0.b32.end [16/16] 0.0, 128
    %v225 = vpop.trf.xlu0
    %v226 = vpop.trf.xlu0
    %v227 = vpop.trf.xlu0
    %v228 = vpop.trf.xlu0
    %v229 = vpop.trf.xlu0
    %v230 = vpop.trf.xlu0
    %v231 = vpop.trf.xlu0
    %v232 = vpop.trf.xlu0
    %v233 = vpop.trf.xlu0
    %v234 = vpop.trf.xlu0
    %v235 = vpop.trf.xlu0
    %v236 = vpop.trf.xlu0
    %v237 = vpop.trf.xlu0
    %v238 = vpop.trf.xlu0
    %v239 = vpop.trf.xlu0
    %v240 = vpop.trf.xlu0
    %v241 = vsub.f32 %v225, %v201
    %v242 = vsub.f32 %v225, %v206
    %v243 = vmul.f32 %v241, %v241
    %vm244 = vcmask 523264
    %v245 = vsel %vm244, %v243, 0.0
    %v246 = vrot.slane %v245, 4
    %v247 = vadd.f32 %v245, %v246
    %v248 = vrot.slane %v247, 2
    %v249 = vadd.f32 %v247, %v248
    %v250 = vrot.slane %v249, 1
    %v251 = vadd.f32 %v249, %v250
    %v252 = vmul.f32 %v242, %v242
    %v253 = vsel %vm244, %v252, 0.0
    %v254 = vrot.slane %v253, 4
    %v255 = vadd.f32 %v253, %v254
    %v256 = vrot.slane %v255, 2
    %v257 = vadd.f32 %v255, %v256
    %v258 = vrot.slane %v257, 1
    %v259 = vadd.f32 %v257, %v258
    %v260 = vmul.f32 %v251, -0.5
    %v261 = vmul.f32 %v260, 1.442695
    %v262 = vpow.pop %v261
    %v263 = vsub.f32 %v259, %v251
    %v264 = vmul.f32 %v262, %v263
    %s265 = sadd.s32 0, 0
    %s266 = smul.u32 %s265, 64
    %v267 = vlaneseq
    %v268 = vand.u32 %v267, 127
    %v269 = vstv %s266
    %v270 = vadd.s32 %v269, %v268
    %vm271 = vcmp.lt.s32.totalorder %v270, 64
    %v272 = vsel %vm271, %v264, 0.0
    %v273 = vld [vmem:[#allocation2] sm:$0x1]
    %v274 = vadd.f32 %v273, %v272
    %vm275 = vcmask 516096
    %276 = vst.msk [vmem:[#allocation2] sm:$0x1] %vm275, %v274
    // Predicated region
    $region18: #{tpu_custom_call.1} parent=1 // pred_check
      _
    $region19: #{tpu_custom_call.1} parent=1 // pred_check_branch
      %278 = sbr.rel (0) target = $region21
    $region20: #{tpu_custom_call.1} parent=1 // pred_region
      %s280 = ssub.s32 16, 16
      %281 = vsyncadd [#allocation3], %s280
      %s283 = sshll.u32 [#allocation2], 4
      %s284 = int_to_ptr.vmem [resolvable:$true] %s283
      %286 = dma.vmem_to_hbm [thread:$0]  %s284, 16, %s3, [#allocation3]
    $region21: #{tpu_custom_call.1} parent=1 // pred_fallthru
      _
    // Predicated region
    $region22: #{tpu_custom_call.1} parent=1 // pred_check
      _
    $region23: #{tpu_custom_call.1} parent=1 // pred_check_branch
      %288 = sbr.rel (0) target = $region25
    $region24: #{tpu_custom_call.1} parent=1 // pred_region
      %289 = dma.done [#allocation3], 16
    $region25: #{tpu_custom_call.1} parent=1 // pred_fallthru
      _
    %290 = vsyncpa [#allocation3], 1

</llo_original>
